<compile_context>
chip_gen: v7x
topology: tpu7x:2x2x1
jax: 0.10.0
libtpu: 0.0.40
codegen_flags: <defaults>
</compile_context>

<pallas_src>
import jax
import jax.numpy as jnp
from jax import lax
from jax.experimental import pallas as pl
from jax.experimental.pallas import tpu as pltpu


def lstm_kernel(vids_ref, tids_ref,      # VMEM: (T, 1) int32 ids
                vproj_ref, tproj_ref,    # VMEM: (Vv_pad, 4H), (Vt_pad, 4H) bf16
                whh_ref,                 # VMEM: (H, 4H) bf16
                b_ref,                   # VMEM: (1, 4H) f32 (b_ih + b_hh)
                h0_ref, c0_ref,          # VMEM: (1, H) f32
                out_ref):                # VMEM out: (T+1, H) f32 (h_1..h_T, c_T)
    T = vids_ref.shape[0]
    H = h0_ref.shape[1]
    Vv = vproj_ref.shape[0]
    Vt = tproj_ref.shape[0]

    # ---- one-hot MXU gather of pre-projected embedding rows (+ bias) -------
    # W_ih is already folded into the tables, so the gathered rows ARE the
    # input-projection contributions; one bf16 matmul per table, f32 acc.
    onehot_v = (vids_ref[...] == lax.broadcasted_iota(jnp.int32, (T, Vv), 1)
                ).astype(jnp.bfloat16)
    onehot_t = (tids_ref[...] == lax.broadcasted_iota(jnp.int32, (T, Vt), 1)
                ).astype(jnp.bfloat16)
    xw = (jnp.dot(onehot_v, vproj_ref[...], preferred_element_type=jnp.float32)
          + jnp.dot(onehot_t, tproj_ref[...], preferred_element_type=jnp.float32)
          + b_ref[...])                                          # (T, 4H) f32

    whh = whh_ref[...]                                           # (H, 4H) bf16

    # ---- recurrence: one (1,H)@(H,4H) matmul + fused gates per step --------
    h = h0_ref[...]                                              # (1, H) f32
    c = c0_ref[...]                                              # (1, H) f32
    hs = []
    for t in range(T):  # T is small & static: fully unrolled
        gates = xw[t:t + 1, :] + jnp.dot(
            h.astype(jnp.bfloat16), whh,
            preferred_element_type=jnp.float32)                  # (1, 4H) f32
        # Full-width EUP pushes; sigmoid via tanh avoids exp + exact divide.
        sig = 0.5 * (jnp.tanh(0.5 * gates) + 1.0)
        th = jnp.tanh(gates)
        i_g = sig[:, 0 * H:1 * H]
        f_g = sig[:, 1 * H:2 * H]
        g_g = th[:, 2 * H:3 * H]
        o_g = sig[:, 3 * H:4 * H]
        c = f_g * c + i_g * g_g
        h = o_g * jnp.tanh(c)
        hs.append(h)

    hs.append(c)                                    # row T holds c_T
    out_ref[...] = jnp.concatenate(hs, axis=0)      # single dense store


@jax.jit
def lstm_pallas(vids, tids, vproj, tproj, whh, bias, h0, c0):
    T = vids.shape[0]
    H = h0.shape[1]
    vmem = pl.BlockSpec(memory_space=pltpu.MemorySpace.VMEM)
    return pl.pallas_call(
        lstm_kernel,
        out_shape=jax.ShapeDtypeStruct((T + 1, H), jnp.float32),
        in_specs=[vmem] * 8,
        out_specs=vmem,
    )(vids, tids, vproj, tproj, whh, bias, h0, c0)


def _pad_rows_to_multiple(x, m):
    r = x.shape[0]
    pad = (-r) % m
    if pad == 0:
        return x
    return jnp.pad(x, ((0, pad), (0, 0)))


class LSTMComponent:
    """JAX/Pallas port of the PyTorch LSTM_component (batch_size = 1)."""

    def __init__(self, vocab_value_size, value_dim, vocab_type_size, type_dim,
                 hidden_dim, batch_size, key):
        assert batch_size == 1, "module (and the PyTorch original) assumes batch=1"
        self.hidden_dim = hidden_dim
        self.batch_size = batch_size

        ks = jax.random.split(key, 6)
        bound = 1.0 / jnp.sqrt(hidden_dim)

        value_embeddings = jax.random.normal(
            ks[0], (vocab_value_size, value_dim), jnp.float32)
        type_embeddings = jax.random.normal(
            ks[1], (vocab_type_size, type_dim), jnp.float32)

        in_dim = value_dim + type_dim
        # PyTorch nn.LSTM params: weight_ih (4H, D), weight_hh (4H, H), biases (4H,)
        weight_ih = jax.random.uniform(
            ks[2], (4 * hidden_dim, in_dim), jnp.float32, -bound, bound)
        weight_hh = jax.random.uniform(
            ks[3], (4 * hidden_dim, hidden_dim), jnp.float32, -bound, bound)
        bias_ih = jax.random.uniform(
            ks[4], (4 * hidden_dim,), jnp.float32, -bound, bound)
        bias_hh = jax.random.uniform(
            ks[5], (4 * hidden_dim,), jnp.float32, -bound, bound)

        # ---- fold W_ih into the embedding tables (hoisted out of forward) ---
        wih_t = weight_ih.T                                   # (D, 4H)
        vproj = value_embeddings @ wih_t[:value_dim, :]       # (Vv, 4H) f32
        tproj = type_embeddings @ wih_t[value_dim:, :]        # (Vt, 4H) f32
        # Pad vocab (sublane) dim to a multiple of 8; padded rows are zero and
        # are never selected by the one-hot gather.
        self.vproj = _pad_rows_to_multiple(vproj, 8).astype(jnp.bfloat16)
        self.tproj = _pad_rows_to_multiple(tproj, 8).astype(jnp.bfloat16)
        self.whh_t = weight_hh.T.astype(jnp.bfloat16)          # (H, 4H) bf16
        self.bias = (bias_ih + bias_hh).reshape(1, -1)         # (1, 4H) f32

    def init_hidden(self):
        return (jnp.zeros((1, self.batch_size, self.hidden_dim), jnp.float32),
                jnp.zeros((1, self.batch_size, self.hidden_dim), jnp.float32))

    def forward(self, sentence, hc):
        value_ids, type_ids = sentence
        T = value_ids.shape[0]
        vids = value_ids.astype(jnp.int32).reshape(T, 1)
        tids = type_ids.astype(jnp.int32).reshape(T, 1)

        h0 = hc[0][0, :1, :]   # (1, H)  (batch=1, matching the PyTorch .view)
        c0 = hc[1][0, :1, :]   # (1, H)

        out = lstm_pallas(vids, tids, self.vproj, self.tproj, self.whh_t,
                          self.bias, h0, c0)                    # (T+1, H)

        lstm_out = out[:T].reshape(T, 1, self.hidden_dim)
        lstm_h = out[T - 1:T].reshape(1, 1, self.hidden_dim)    # h_T = last h
        lstm_c = out[T:T + 1].reshape(1, 1, self.hidden_dim)    # c_T
        return lstm_out, lstm_h, lstm_c


def _reference_lstm(value_ids, type_ids, vproj, tproj, whh_t, bias, h0, c0, H):
    """Pure-JAX reference using the same folded/cast parameters."""
    xw = (vproj[value_ids].astype(jnp.float32)
          + tproj[type_ids].astype(jnp.float32) + bias)
    whh = whh_t.astype(jnp.float32)
    h, c = h0, c0
    outs = []
    for t in range(value_ids.shape[0]):
        g = xw[t:t + 1] + h @ whh
        i = jax.nn.sigmoid(g[:, 0 * H:1 * H])
        f = jax.nn.sigmoid(g[:, 1 * H:2 * H])
        gg = jnp.tanh(g[:, 2 * H:3 * H])
        o = jax.nn.sigmoid(g[:, 3 * H:4 * H])
        c = f * c + i * gg
        h = o * jnp.tanh(c)
        outs.append(h)
    return jnp.concatenate(outs, axis=0), h, c


if __name__ == "__main__":
    key = jax.random.PRNGKey(0)
    k_model, k_val, k_typ = jax.random.split(key, 3)

    vocab_value_size, value_dim = 50, 16
    vocab_type_size, type_dim = 20, 16
    hidden_dim, batch_size, seq_len = 32, 1, 8

    model = LSTMComponent(vocab_value_size, value_dim, vocab_type_size,
                          type_dim, hidden_dim, batch_size, k_model)

    value_ids = jax.random.randint(k_val, (seq_len,), 0, vocab_value_size)
    type_ids = jax.random.randint(k_typ, (seq_len,), 0, vocab_type_size)
    hc = model.init_hidden()

    lstm_out, lstm_h, lstm_c = model.forward((value_ids, type_ids), hc)
    jax.block_until_ready((lstm_out, lstm_h, lstm_c))

    assert lstm_out.shape == (seq_len, 1, hidden_dim)
    assert lstm_h.shape == (1, 1, hidden_dim)
    assert lstm_c.shape == (1, 1, hidden_dim)
    assert bool(jnp.all(jnp.isfinite(lstm_out)))

    # Loose-tolerance sanity check against a pure-JAX reference (bf16 MXU path
    # vs f32 reference -> small numeric deviation expected).
    ref_out, ref_h, ref_c = _reference_lstm(
        value_ids, type_ids, model.vproj, model.tproj, model.whh_t, model.bias,
        hc[0][0, :1, :], hc[1][0, :1, :], hidden_dim)
    assert bool(jnp.max(jnp.abs(lstm_out[:, 0, :] - ref_out)) < 0.05)
    assert bool(jnp.max(jnp.abs(lstm_c[0] - ref_c)) < 0.05)

    print("KERNEL_OK")
</pallas_src>

<mosaic_0001>
module attributes {stable_mosaic.version = 11 : i64} {
  func.func @lstm_kernel(%arg0: memref<8x1xi32, #tpu.memory_space<vmem>>, %arg1: memref<8x1xi32, #tpu.memory_space<vmem>>, %arg2: memref<56x128xbf16, #tpu.memory_space<vmem>>, %arg3: memref<24x128xbf16, #tpu.memory_space<vmem>>, %arg4: memref<32x128xbf16, #tpu.memory_space<vmem>>, %arg5: memref<1x128xf32, #tpu.memory_space<vmem>>, %arg6: memref<1x32xf32, #tpu.memory_space<vmem>>, %arg7: memref<1x32xf32, #tpu.memory_space<vmem>>, %arg8: memref<9x32xf32, #tpu.memory_space<vmem>>) attributes {dimension_semantics = [], scalar_prefetch = 0 : i64, scratch_operands = 0 : i64, tpu.core_type = #tpu.core_type<tc>} {
    %c0 = arith.constant 0 : index
    %c0_0 = arith.constant 0 : index
    %0 = vector.load %arg0[%c0, %c0_0] : memref<8x1xi32, #tpu.memory_space<vmem>>, vector<8x1xi32>
    %1 = tpu.iota {dimensions = array<i32: 1>} : vector<8x56xi32>
    %2 = vector.broadcast %0 : vector<8x1xi32> to vector<8x56xi32>
    %3 = arith.cmpi eq, %2, %1 : vector<8x56xi32>
    %4 = arith.extui %3 : vector<8x56xi1> to vector<8x56xi32>
    %5 = arith.sitofp %4 : vector<8x56xi32> to vector<8x56xf32>
    %6 = arith.truncf %5 : vector<8x56xf32> to vector<8x56xbf16>
    %c0_1 = arith.constant 0 : index
    %c0_2 = arith.constant 0 : index
    %7 = vector.load %arg1[%c0_1, %c0_2] : memref<8x1xi32, #tpu.memory_space<vmem>>, vector<8x1xi32>
    %8 = tpu.iota {dimensions = array<i32: 1>} : vector<8x24xi32>
    %9 = vector.broadcast %7 : vector<8x1xi32> to vector<8x24xi32>
    %10 = arith.cmpi eq, %9, %8 : vector<8x24xi32>
    %11 = arith.extui %10 : vector<8x24xi1> to vector<8x24xi32>
    %12 = arith.sitofp %11 : vector<8x24xi32> to vector<8x24xf32>
    %13 = arith.truncf %12 : vector<8x24xf32> to vector<8x24xbf16>
    %c0_3 = arith.constant 0 : index
    %c0_4 = arith.constant 0 : index
    %14 = vector.load %arg2[%c0_3, %c0_4] : memref<56x128xbf16, #tpu.memory_space<vmem>>, vector<56x128xbf16>
    %cst = arith.constant dense<0.000000e+00> : vector<8x128xf32>
    %15 = tpu.matmul %6, %14, %cst {dimension_numbers = #tpu.dot_dimension_numbers<[1], [0], [0], [1], [0, 0, 1, 1], [], []>} : vector<8x56xbf16>, vector<56x128xbf16>, vector<8x128xf32> -> vector<8x128xf32>
    %c0_5 = arith.constant 0 : index
    %c0_6 = arith.constant 0 : index
    %16 = vector.load %arg3[%c0_5, %c0_6] : memref<24x128xbf16, #tpu.memory_space<vmem>>, vector<24x128xbf16>
    %cst_7 = arith.constant dense<0.000000e+00> : vector<8x128xf32>
    %17 = tpu.matmul %13, %16, %cst_7 {dimension_numbers = #tpu.dot_dimension_numbers<[1], [0], [0], [1], [0, 0, 1, 1], [], []>} : vector<8x24xbf16>, vector<24x128xbf16>, vector<8x128xf32> -> vector<8x128xf32>
    %18 = arith.addf %15, %17 : vector<8x128xf32>
    %c0_8 = arith.constant 0 : index
    %c0_9 = arith.constant 0 : index
    %19 = vector.load %arg5[%c0_8, %c0_9] : memref<1x128xf32, #tpu.memory_space<vmem>>, vector<1x128xf32>
    %20 = vector.broadcast %19 : vector<1x128xf32> to vector<8x128xf32>
    %21 = arith.addf %18, %20 : vector<8x128xf32>
    %c0_10 = arith.constant 0 : index
    %c0_11 = arith.constant 0 : index
    %22 = vector.load %arg4[%c0_10, %c0_11] : memref<32x128xbf16, #tpu.memory_space<vmem>>, vector<32x128xbf16>
    %c0_12 = arith.constant 0 : index
    %c0_13 = arith.constant 0 : index
    %23 = vector.load %arg6[%c0_12, %c0_13] : memref<1x32xf32, #tpu.memory_space<vmem>>, vector<1x32xf32>
    %c0_14 = arith.constant 0 : index
    %c0_15 = arith.constant 0 : index
    %24 = vector.load %arg7[%c0_14, %c0_15] : memref<1x32xf32, #tpu.memory_space<vmem>>, vector<1x32xf32>
    %25 = vector.extract_strided_slice %21 {offsets = [0, 0], sizes = [1, 128], strides = [1, 1]} : vector<8x128xf32> to vector<1x128xf32>
    %26 = arith.truncf %23 : vector<1x32xf32> to vector<1x32xbf16>
    %cst_16 = arith.constant dense<0.000000e+00> : vector<1x128xf32>
    %27 = tpu.matmul %26, %22, %cst_16 {dimension_numbers = #tpu.dot_dimension_numbers<[1], [0], [0], [1], [0, 0, 1, 1], [], []>} : vector<1x32xbf16>, vector<32x128xbf16>, vector<1x128xf32> -> vector<1x128xf32>
    %28 = arith.addf %25, %27 : vector<1x128xf32>
    %cst_17 = arith.constant 5.000000e-01 : f32
    %29 = vector.broadcast %cst_17 : f32 to vector<1x128xf32>
    %30 = arith.mulf %29, %28 : vector<1x128xf32>
    %31 = math.tanh %30 : vector<1x128xf32>
    %cst_18 = arith.constant 1.000000e+00 : f32
    %32 = vector.broadcast %cst_18 : f32 to vector<1x128xf32>
    %33 = arith.addf %31, %32 : vector<1x128xf32>
    %cst_19 = arith.constant 5.000000e-01 : f32
    %34 = vector.broadcast %cst_19 : f32 to vector<1x128xf32>
    %35 = arith.mulf %34, %33 : vector<1x128xf32>
    %36 = math.tanh %28 : vector<1x128xf32>
    %37 = vector.extract_strided_slice %35 {offsets = [0, 0], sizes = [1, 32], strides = [1, 1]} : vector<1x128xf32> to vector<1x32xf32>
    %38 = vector.extract_strided_slice %35 {offsets = [0, 32], sizes = [1, 32], strides = [1, 1]} : vector<1x128xf32> to vector<1x32xf32>
    %39 = vector.extract_strided_slice %36 {offsets = [0, 64], sizes = [1, 32], strides = [1, 1]} : vector<1x128xf32> to vector<1x32xf32>
    %40 = vector.extract_strided_slice %35 {offsets = [0, 96], sizes = [1, 32], strides = [1, 1]} : vector<1x128xf32> to vector<1x32xf32>
    %41 = arith.mulf %38, %24 : vector<1x32xf32>
    %42 = arith.mulf %37, %39 : vector<1x32xf32>
    %43 = arith.addf %41, %42 : vector<1x32xf32>
    %44 = math.tanh %43 : vector<1x32xf32>
    %45 = arith.mulf %40, %44 : vector<1x32xf32>
    %46 = vector.extract_strided_slice %21 {offsets = [1, 0], sizes = [1, 128], strides = [1, 1]} : vector<8x128xf32> to vector<1x128xf32>
    %47 = arith.truncf %45 : vector<1x32xf32> to vector<1x32xbf16>
    %cst_20 = arith.constant dense<0.000000e+00> : vector<1x128xf32>
    %48 = tpu.matmul %47, %22, %cst_20 {dimension_numbers = #tpu.dot_dimension_numbers<[1], [0], [0], [1], [0, 0, 1, 1], [], []>} : vector<1x32xbf16>, vector<32x128xbf16>, vector<1x128xf32> -> vector<1x128xf32>
    %49 = arith.addf %46, %48 : vector<1x128xf32>
    %cst_21 = arith.constant 5.000000e-01 : f32
    %50 = vector.broadcast %cst_21 : f32 to vector<1x128xf32>
    %51 = arith.mulf %50, %49 : vector<1x128xf32>
    %52 = math.tanh %51 : vector<1x128xf32>
    %cst_22 = arith.constant 1.000000e+00 : f32
    %53 = vector.broadcast %cst_22 : f32 to vector<1x128xf32>
    %54 = arith.addf %52, %53 : vector<1x128xf32>
    %cst_23 = arith.constant 5.000000e-01 : f32
    %55 = vector.broadcast %cst_23 : f32 to vector<1x128xf32>
    %56 = arith.mulf %55, %54 : vector<1x128xf32>
    %57 = math.tanh %49 : vector<1x128xf32>
    %58 = vector.extract_strided_slice %56 {offsets = [0, 0], sizes = [1, 32], strides = [1, 1]} : vector<1x128xf32> to vector<1x32xf32>
    %59 = vector.extract_strided_slice %56 {offsets = [0, 32], sizes = [1, 32], strides = [1, 1]} : vector<1x128xf32> to vector<1x32xf32>
    %60 = vector.extract_strided_slice %57 {offsets = [0, 64], sizes = [1, 32], strides = [1, 1]} : vector<1x128xf32> to vector<1x32xf32>
    %61 = vector.extract_strided_slice %56 {offsets = [0, 96], sizes = [1, 32], strides = [1, 1]} : vector<1x128xf32> to vector<1x32xf32>
    %62 = arith.mulf %59, %43 : vector<1x32xf32>
    %63 = arith.mulf %58, %60 : vector<1x32xf32>
    %64 = arith.addf %62, %63 : vector<1x32xf32>
    %65 = math.tanh %64 : vector<1x32xf32>
    %66 = arith.mulf %61, %65 : vector<1x32xf32>
    %67 = vector.extract_strided_slice %21 {offsets = [2, 0], sizes = [1, 128], strides = [1, 1]} : vector<8x128xf32> to vector<1x128xf32>
    %68 = arith.truncf %66 : vector<1x32xf32> to vector<1x32xbf16>
    %cst_24 = arith.constant dense<0.000000e+00> : vector<1x128xf32>
    %69 = tpu.matmul %68, %22, %cst_24 {dimension_numbers = #tpu.dot_dimension_numbers<[1], [0], [0], [1], [0, 0, 1, 1], [], []>} : vector<1x32xbf16>, vector<32x128xbf16>, vector<1x128xf32> -> vector<1x128xf32>
    %70 = arith.addf %67, %69 : vector<1x128xf32>
    %cst_25 = arith.constant 5.000000e-01 : f32
    %71 = vector.broadcast %cst_25 : f32 to vector<1x128xf32>
    %72 = arith.mulf %71, %70 : vector<1x128xf32>
    %73 = math.tanh %72 : vector<1x128xf32>
    %cst_26 = arith.constant 1.000000e+00 : f32
    %74 = vector.broadcast %cst_26 : f32 to vector<1x128xf32>
    %75 = arith.addf %73, %74 : vector<1x128xf32>
    %cst_27 = arith.constant 5.000000e-01 : f32
    %76 = vector.broadcast %cst_27 : f32 to vector<1x128xf32>
    %77 = arith.mulf %76, %75 : vector<1x128xf32>
    %78 = math.tanh %70 : vector<1x128xf32>
    %79 = vector.extract_strided_slice %77 {offsets = [0, 0], sizes = [1, 32], strides = [1, 1]} : vector<1x128xf32> to vector<1x32xf32>
    %80 = vector.extract_strided_slice %77 {offsets = [0, 32], sizes = [1, 32], strides = [1, 1]} : vector<1x128xf32> to vector<1x32xf32>
    %81 = vector.extract_strided_slice %78 {offsets = [0, 64], sizes = [1, 32], strides = [1, 1]} : vector<1x128xf32> to vector<1x32xf32>
    %82 = vector.extract_strided_slice %77 {offsets = [0, 96], sizes = [1, 32], strides = [1, 1]} : vector<1x128xf32> to vector<1x32xf32>
    %83 = arith.mulf %80, %64 : vector<1x32xf32>
    %84 = arith.mulf %79, %81 : vector<1x32xf32>
    %85 = arith.addf %83, %84 : vector<1x32xf32>
    %86 = math.tanh %85 : vector<1x32xf32>
    %87 = arith.mulf %82, %86 : vector<1x32xf32>
    %88 = vector.extract_strided_slice %21 {offsets = [3, 0], sizes = [1, 128], strides = [1, 1]} : vector<8x128xf32> to vector<1x128xf32>
    %89 = arith.truncf %87 : vector<1x32xf32> to vector<1x32xbf16>
    %cst_28 = arith.constant dense<0.000000e+00> : vector<1x128xf32>
    %90 = tpu.matmul %89, %22, %cst_28 {dimension_numbers = #tpu.dot_dimension_numbers<[1], [0], [0], [1], [0, 0, 1, 1], [], []>} : vector<1x32xbf16>, vector<32x128xbf16>, vector<1x128xf32> -> vector<1x128xf32>
    %91 = arith.addf %88, %90 : vector<1x128xf32>
    %cst_29 = arith.constant 5.000000e-01 : f32
    %92 = vector.broadcast %cst_29 : f32 to vector<1x128xf32>
    %93 = arith.mulf %92, %91 : vector<1x128xf32>
    %94 = math.tanh %93 : vector<1x128xf32>
    %cst_30 = arith.constant 1.000000e+00 : f32
    %95 = vector.broadcast %cst_30 : f32 to vector<1x128xf32>
    %96 = arith.addf %94, %95 : vector<1x128xf32>
    %cst_31 = arith.constant 5.000000e-01 : f32
    %97 = vector.broadcast %cst_31 : f32 to vector<1x128xf32>
    %98 = arith.mulf %97, %96 : vector<1x128xf32>
    %99 = math.tanh %91 : vector<1x128xf32>
    %100 = vector.extract_strided_slice %98 {offsets = [0, 0], sizes = [1, 32], strides = [1, 1]} : vector<1x128xf32> to vector<1x32xf32>
    %101 = vector.extract_strided_slice %98 {offsets = [0, 32], sizes = [1, 32], strides = [1, 1]} : vector<1x128xf32> to vector<1x32xf32>
    %102 = vector.extract_strided_slice %99 {offsets = [0, 64], sizes = [1, 32], strides = [1, 1]} : vector<1x128xf32> to vector<1x32xf32>
    %103 = vector.extract_strided_slice %98 {offsets = [0, 96], sizes = [1, 32], strides = [1, 1]} : vector<1x128xf32> to vector<1x32xf32>
    %104 = arith.mulf %101, %85 : vector<1x32xf32>
    %105 = arith.mulf %100, %102 : vector<1x32xf32>
    %106 = arith.addf %104, %105 : vector<1x32xf32>
    %107 = math.tanh %106 : vector<1x32xf32>
    %108 = arith.mulf %103, %107 : vector<1x32xf32>
    %109 = vector.extract_strided_slice %21 {offsets = [4, 0], sizes = [1, 128], strides = [1, 1]} : vector<8x128xf32> to vector<1x128xf32>
    %110 = arith.truncf %108 : vector<1x32xf32> to vector<1x32xbf16>
    %cst_32 = arith.constant dense<0.000000e+00> : vector<1x128xf32>
    %111 = tpu.matmul %110, %22, %cst_32 {dimension_numbers = #tpu.dot_dimension_numbers<[1], [0], [0], [1], [0, 0, 1, 1], [], []>} : vector<1x32xbf16>, vector<32x128xbf16>, vector<1x128xf32> -> vector<1x128xf32>
    %112 = arith.addf %109, %111 : vector<1x128xf32>
    %cst_33 = arith.constant 5.000000e-01 : f32
    %113 = vector.broadcast %cst_33 : f32 to vector<1x128xf32>
    %114 = arith.mulf %113, %112 : vector<1x128xf32>
    %115 = math.tanh %114 : vector<1x128xf32>
    %cst_34 = arith.constant 1.000000e+00 : f32
    %116 = vector.broadcast %cst_34 : f32 to vector<1x128xf32>
    %117 = arith.addf %115, %116 : vector<1x128xf32>
    %cst_35 = arith.constant 5.000000e-01 : f32
    %118 = vector.broadcast %cst_35 : f32 to vector<1x128xf32>
    %119 = arith.mulf %118, %117 : vector<1x128xf32>
    %120 = math.tanh %112 : vector<1x128xf32>
    %121 = vector.extract_strided_slice %119 {offsets = [0, 0], sizes = [1, 32], strides = [1, 1]} : vector<1x128xf32> to vector<1x32xf32>
    %122 = vector.extract_strided_slice %119 {offsets = [0, 32], sizes = [1, 32], strides = [1, 1]} : vector<1x128xf32> to vector<1x32xf32>
    %123 = vector.extract_strided_slice %120 {offsets = [0, 64], sizes = [1, 32], strides = [1, 1]} : vector<1x128xf32> to vector<1x32xf32>
    %124 = vector.extract_strided_slice %119 {offsets = [0, 96], sizes = [1, 32], strides = [1, 1]} : vector<1x128xf32> to vector<1x32xf32>
    %125 = arith.mulf %122, %106 : vector<1x32xf32>
    %126 = arith.mulf %121, %123 : vector<1x32xf32>
    %127 = arith.addf %125, %126 : vector<1x32xf32>
    %128 = math.tanh %127 : vector<1x32xf32>
    %129 = arith.mulf %124, %128 : vector<1x32xf32>
    %130 = vector.extract_strided_slice %21 {offsets = [5, 0], sizes = [1, 128], strides = [1, 1]} : vector<8x128xf32> to vector<1x128xf32>
    %131 = arith.truncf %129 : vector<1x32xf32> to vector<1x32xbf16>
    %cst_36 = arith.constant dense<0.000000e+00> : vector<1x128xf32>
    %132 = tpu.matmul %131, %22, %cst_36 {dimension_numbers = #tpu.dot_dimension_numbers<[1], [0], [0], [1], [0, 0, 1, 1], [], []>} : vector<1x32xbf16>, vector<32x128xbf16>, vector<1x128xf32> -> vector<1x128xf32>
    %133 = arith.addf %130, %132 : vector<1x128xf32>
    %cst_37 = arith.constant 5.000000e-01 : f32
    %134 = vector.broadcast %cst_37 : f32 to vector<1x128xf32>
    %135 = arith.mulf %134, %133 : vector<1x128xf32>
    %136 = math.tanh %135 : vector<1x128xf32>
    %cst_38 = arith.constant 1.000000e+00 : f32
    %137 = vector.broadcast %cst_38 : f32 to vector<1x128xf32>
    %138 = arith.addf %136, %137 : vector<1x128xf32>
    %cst_39 = arith.constant 5.000000e-01 : f32
    %139 = vector.broadcast %cst_39 : f32 to vector<1x128xf32>
    %140 = arith.mulf %139, %138 : vector<1x128xf32>
    %141 = math.tanh %133 : vector<1x128xf32>
    %142 = vector.extract_strided_slice %140 {offsets = [0, 0], sizes = [1, 32], strides = [1, 1]} : vector<1x128xf32> to vector<1x32xf32>
    %143 = vector.extract_strided_slice %140 {offsets = [0, 32], sizes = [1, 32], strides = [1, 1]} : vector<1x128xf32> to vector<1x32xf32>
    %144 = vector.extract_strided_slice %141 {offsets = [0, 64], sizes = [1, 32], strides = [1, 1]} : vector<1x128xf32> to vector<1x32xf32>
    %145 = vector.extract_strided_slice %140 {offsets = [0, 96], sizes = [1, 32], strides = [1, 1]} : vector<1x128xf32> to vector<1x32xf32>
    %146 = arith.mulf %143, %127 : vector<1x32xf32>
    %147 = arith.mulf %142, %144 : vector<1x32xf32>
    %148 = arith.addf %146, %147 : vector<1x32xf32>
    %149 = math.tanh %148 : vector<1x32xf32>
    %150 = arith.mulf %145, %149 : vector<1x32xf32>
    %151 = vector.extract_strided_slice %21 {offsets = [6, 0], sizes = [1, 128], strides = [1, 1]} : vector<8x128xf32> to vector<1x128xf32>
    %152 = arith.truncf %150 : vector<1x32xf32> to vector<1x32xbf16>
    %cst_40 = arith.constant dense<0.000000e+00> : vector<1x128xf32>
    %153 = tpu.matmul %152, %22, %cst_40 {dimension_numbers = #tpu.dot_dimension_numbers<[1], [0], [0], [1], [0, 0, 1, 1], [], []>} : vector<1x32xbf16>, vector<32x128xbf16>, vector<1x128xf32> -> vector<1x128xf32>
    %154 = arith.addf %151, %153 : vector<1x128xf32>
    %cst_41 = arith.constant 5.000000e-01 : f32
    %155 = vector.broadcast %cst_41 : f32 to vector<1x128xf32>
    %156 = arith.mulf %155, %154 : vector<1x128xf32>
    %157 = math.tanh %156 : vector<1x128xf32>
    %cst_42 = arith.constant 1.000000e+00 : f32
    %158 = vector.broadcast %cst_42 : f32 to vector<1x128xf32>
    %159 = arith.addf %157, %158 : vector<1x128xf32>
    %cst_43 = arith.constant 5.000000e-01 : f32
    %160 = vector.broadcast %cst_43 : f32 to vector<1x128xf32>
    %161 = arith.mulf %160, %159 : vector<1x128xf32>
    %162 = math.tanh %154 : vector<1x128xf32>
    %163 = vector.extract_strided_slice %161 {offsets = [0, 0], sizes = [1, 32], strides = [1, 1]} : vector<1x128xf32> to vector<1x32xf32>
    %164 = vector.extract_strided_slice %161 {offsets = [0, 32], sizes = [1, 32], strides = [1, 1]} : vector<1x128xf32> to vector<1x32xf32>
    %165 = vector.extract_strided_slice %162 {offsets = [0, 64], sizes = [1, 32], strides = [1, 1]} : vector<1x128xf32> to vector<1x32xf32>
    %166 = vector.extract_strided_slice %161 {offsets = [0, 96], sizes = [1, 32], strides = [1, 1]} : vector<1x128xf32> to vector<1x32xf32>
    %167 = arith.mulf %164, %148 : vector<1x32xf32>
    %168 = arith.mulf %163, %165 : vector<1x32xf32>
    %169 = arith.addf %167, %168 : vector<1x32xf32>
    %170 = math.tanh %169 : vector<1x32xf32>
    %171 = arith.mulf %166, %170 : vector<1x32xf32>
    %172 = vector.extract_strided_slice %21 {offsets = [7, 0], sizes = [1, 128], strides = [1, 1]} : vector<8x128xf32> to vector<1x128xf32>
    %173 = arith.truncf %171 : vector<1x32xf32> to vector<1x32xbf16>
    %cst_44 = arith.constant dense<0.000000e+00> : vector<1x128xf32>
    %174 = tpu.matmul %173, %22, %cst_44 {dimension_numbers = #tpu.dot_dimension_numbers<[1], [0], [0], [1], [0, 0, 1, 1], [], []>} : vector<1x32xbf16>, vector<32x128xbf16>, vector<1x128xf32> -> vector<1x128xf32>
    %175 = arith.addf %172, %174 : vector<1x128xf32>
    %cst_45 = arith.constant 5.000000e-01 : f32
    %176 = vector.broadcast %cst_45 : f32 to vector<1x128xf32>
    %177 = arith.mulf %176, %175 : vector<1x128xf32>
    %178 = math.tanh %177 : vector<1x128xf32>
    %cst_46 = arith.constant 1.000000e+00 : f32
    %179 = vector.broadcast %cst_46 : f32 to vector<1x128xf32>
    %180 = arith.addf %178, %179 : vector<1x128xf32>
    %cst_47 = arith.constant 5.000000e-01 : f32
    %181 = vector.broadcast %cst_47 : f32 to vector<1x128xf32>
    %182 = arith.mulf %181, %180 : vector<1x128xf32>
    %183 = math.tanh %175 : vector<1x128xf32>
    %184 = vector.extract_strided_slice %182 {offsets = [0, 0], sizes = [1, 32], strides = [1, 1]} : vector<1x128xf32> to vector<1x32xf32>
    %185 = vector.extract_strided_slice %182 {offsets = [0, 32], sizes = [1, 32], strides = [1, 1]} : vector<1x128xf32> to vector<1x32xf32>
    %186 = vector.extract_strided_slice %183 {offsets = [0, 64], sizes = [1, 32], strides = [1, 1]} : vector<1x128xf32> to vector<1x32xf32>
    %187 = vector.extract_strided_slice %182 {offsets = [0, 96], sizes = [1, 32], strides = [1, 1]} : vector<1x128xf32> to vector<1x32xf32>
    %188 = arith.mulf %185, %169 : vector<1x32xf32>
    %189 = arith.mulf %184, %186 : vector<1x32xf32>
    %190 = arith.addf %188, %189 : vector<1x32xf32>
    %191 = math.tanh %190 : vector<1x32xf32>
    %192 = arith.mulf %187, %191 : vector<1x32xf32>
    %193 = tpu.concatenate %45, %66, %87, %108, %129, %150, %171, %192, %190 in 0 : vector<1x32xf32>, vector<1x32xf32>, vector<1x32xf32>, vector<1x32xf32>, vector<1x32xf32>, vector<1x32xf32>, vector<1x32xf32>, vector<1x32xf32>, vector<1x32xf32> -> vector<9x32xf32>
    %c0_48 = arith.constant 0 : index
    %c0_49 = arith.constant 0 : index
    %194 = vector.load %arg8[%c0_48, %c0_49] : memref<9x32xf32, #tpu.memory_space<vmem>>, vector<9x32xf32>
    tpu.vector_store %arg8[%c0_48, %c0_49], %193 {strides = array<i32>} : memref<9x32xf32, #tpu.memory_space<vmem>>, vector<9x32xf32>,
    return
  }
}

</mosaic_0001>

<llo_original>
// kernel: lstm_pallas.1
$region0: #{lstm_pallas.1}
  #allocation0 [shape = 'u32[]', space=smem, size = 0x4, offset = 0x4, fixed_abs, tag = 'smem constant byte address 0x4 - core index']
  #allocation1 [shape = 'u32[144,128]{1,0:T(1,128)}', space=vmem, size = 0x12000, scoped, tag = 'internal scratch']
  %s0 = inlined_call_operand.vmem [shape: s32[8,1], index: 0, kind: input, shape index: {}]
  %s1 = inlined_call_operand.vmem [shape: s32[8,1], index: 1, kind: input, shape index: {}]
  %s2 = inlined_call_operand.hbm [shape: bf16[56,128], index: 2, kind: input, shape index: {}]
  %s3 = inlined_call_operand.vmem [shape: bf16[24,128], index: 3, kind: input, shape index: {}]
  %s4 = inlined_call_operand.vmem [shape: bf16[32,128], index: 4, kind: input, shape index: {}]
  %s5 = inlined_call_operand.vmem [shape: f32[1,128], index: 5, kind: input, shape index: {}]
  %s6 = inlined_call_operand.vmem [shape: f32[1,32], index: 6, kind: input, shape index: {}]
  %s7 = inlined_call_operand.vmem [shape: f32[1,32], index: 7, kind: input, shape index: {}]
  %s8 = inlined_call_operand.hbm [shape: f32[9,32], index: 8, kind: output, shape index: {}]
  %s9 = sld [smem:[#allocation0]]
  $region46: #{lstm_pallas.1} parent=0
    _
  %s11 = ssub.s32 1, %s9
  %s12 = scalar_select 0, %s11, %s9
  $region1: #{lstm_pallas.1} parent=0
    #allocation2 [shape = 'u8[14336]{0}', space=vmem, size = 0x3800, scoped, tag = 'input window, operand 2, single buffered']
    #allocation3 [shape = 's32[1]{0}', space=sflag, size = 0x4, scoped, tag = 'scoped memory for lstm_pallas.1']
    #allocation4 [shape = 's32[1]{0}', space=sflag, size = 0x4, scoped, tag = 'scoped memory for lstm_pallas.1']
    #allocation5 [shape = 'u8[8192]{0}', space=vmem, size = 0x2000, scoped, tag = 'output window, operand 0, single buffered']
    %13 = vsyncpa [#allocation3], 0
    %14 = vsyncpa [#allocation4], 0
    // Predicated region
    $region2: #{lstm_pallas.1} parent=1 // pred_check
      _
    $region3: #{lstm_pallas.1} parent=1 // pred_check_branch
      %16 = sbr.rel (0) target = $region5
    $region4: #{lstm_pallas.1} parent=1 // pred_region
      _
    $region5: #{lstm_pallas.1} parent=1 // pred_fallthru
      _
    // Predicated region
    $region6: #{lstm_pallas.1} parent=1 // pred_check
      _
    $region7: #{lstm_pallas.1} parent=1 // pred_check_branch
      %18 = sbr.rel (0) target = $region9
    $region8: #{lstm_pallas.1} parent=1 // pred_region
      _
    $region9: #{lstm_pallas.1} parent=1 // pred_fallthru
      _
    // Predicated region
    $region10: #{lstm_pallas.1} parent=1 // pred_check
      _
    $region11: #{lstm_pallas.1} parent=1 // pred_check_branch
      %20 = sbr.rel (0) target = $region13
    $region12: #{lstm_pallas.1} parent=1 // pred_region
      %s22 = ssub.s32 448, 448
      %23 = vsyncadd [#allocation3], %s22
      %s24 = sshll.u32 [#allocation2], 4
      %s25 = int_to_ptr.vmem [resolvable:$true] %s24
      %30 = dma.hbm_to_vmem [thread:$0]  %s2, 448, %s25, [#allocation3], 64, 64, 4
    $region13: #{lstm_pallas.1} parent=1 // pred_fallthru
      _
    // Predicated region
    $region14: #{lstm_pallas.1} parent=1 // pred_check
      _
    $region15: #{lstm_pallas.1} parent=1 // pred_check_branch
      %32 = sbr.rel (0) target = $region17
    $region16: #{lstm_pallas.1} parent=1 // pred_region
      _
    $region17: #{lstm_pallas.1} parent=1 // pred_fallthru
      _
    // Predicated region
    $region18: #{lstm_pallas.1} parent=1 // pred_check
      _
    $region19: #{lstm_pallas.1} parent=1 // pred_check_branch
      %34 = sbr.rel (0) target = $region21
    $region20: #{lstm_pallas.1} parent=1 // pred_region
      _
    $region21: #{lstm_pallas.1} parent=1 // pred_fallthru
      _
    // Predicated region
    $region22: #{lstm_pallas.1} parent=1 // pred_check
      _
    $region23: #{lstm_pallas.1} parent=1 // pred_check_branch
      %36 = sbr.rel (0) target = $region25
    $region24: #{lstm_pallas.1} parent=1 // pred_region
      _
    $region25: #{lstm_pallas.1} parent=1 // pred_fallthru
      _
    // Predicated region
    $region26: #{lstm_pallas.1} parent=1 // pred_check
      _
    $region27: #{lstm_pallas.1} parent=1 // pred_check_branch
      %38 = sbr.rel (0) target = $region29
    $region28: #{lstm_pallas.1} parent=1 // pred_region
      _
    $region29: #{lstm_pallas.1} parent=1 // pred_fallthru
      _
    // Predicated region
    $region30: #{lstm_pallas.1} parent=1 // pred_check
      _
    $region31: #{lstm_pallas.1} parent=1 // pred_check_branch
      %40 = sbr.rel (0) target = $region33
    $region32: #{lstm_pallas.1} parent=1 // pred_region
      _
    $region33: #{lstm_pallas.1} parent=1 // pred_fallthru
      _
    // Predicated region
    $region34: #{lstm_pallas.1} parent=1 // pred_check
      _
    $region35: #{lstm_pallas.1} parent=1 // pred_check_branch
      %42 = sbr.rel (0) target = $region37
    $region36: #{lstm_pallas.1} parent=1 // pred_region
      %43 = dma.done [#allocation3], 448
    $region37: #{lstm_pallas.1} parent=1 // pred_fallthru
      _
    %v45 = vld [vmem:[%s0] sm:$0xff]
    %v46 = vlaneseq
    %v47 = vand.u32 %v46, 127
    %48 = vset.pattern.permute.xlu0 0
    %49 = vperm.xlu0 %48, %v45
    %v50 = vpop.permute.xlu0 %49
    %vm51 = vcmp.eq.s32.totalorder %v50, %v47
    %v52 = vsel %vm51, 1, 0
    %v53 = vcvt.s32.f32 %v52
    %v54 = vpack.c.bf16 %v53, %v53
    %v55 = vld [vmem:[%s1] sm:$0xff]
    %56 = vset.pattern.permute.xlu0 0
    %57 = vperm.xlu0 %56, %v55
    %v58 = vpop.permute.xlu0 %57
    %vm59 = vcmp.eq.s32.totalorder %v58, %v47
    %v60 = vsel %vm59, 1, 0
    %v61 = vcvt.s32.f32 %v60
    %v62 = vpack.c.bf16 %v61, %v61
    %v63 = vld [vmem:[#allocation2] sm:$0xf]
    %v64 = vld [vmem:[#allocation2 + $0x4] sm:$0xf]
    %v65 = vld [vmem:[#allocation2 + $0x8] sm:$0xf]
    %v66 = vld [vmem:[#allocation2 + $0xc] sm:$0xf]
    %v67 = vld [vmem:[#allocation2 + $0x10] sm:$0xf]
    %v68 = vld [vmem:[#allocation2 + $0x14] sm:$0xf]
    %v69 = vld [vmem:[#allocation2 + $0x18] sm:$0xf]
    %v70 = vld [vmem:[%s3] sm:$0xf]
    %v71 = vld [vmem:[%s3 + $0x4] sm:$0xf]
    %v72 = vld [vmem:[%s3 + $0x8] sm:$0xf]
    %v76 = vunpack.c.l.b16 %v70
    %v77 = vunpack.c.l.b16 %v71
    %v78 = vunpack.c.l.b16 %v72
    %v79 = vpack.c.b16 %v77, %v76
    %v80 = vpack.c.b16 %v78, %v78
    %vm82 = vcmask 195584
    %v84 = vsel %vm82, %v62, 0
    %vm86 = vcmask 1043456
    %v88 = vsel %vm86, %v80, 0
    %90 = vmatprep.subr.bf16.mxu0 0
    %91 = vmatpush1.bf16.msra.mxu0 %v79
    %92 = vmatprep.subr.bf16.mxu0 0
    %93 = vmatpush1.bf16.msra.mxu0 %v88
    %94 = vmatprep.subr.bf16.mxu0 0
    %95 = vmatpush1.bf16.msra.mxu0 0
    %96 = vmatprep.subr.bf16.mxu0 0
    %97 = vmatpush1.bf16.msra.mxu0 0
    %98 = vmatprep.subr.bf16.mxu0 0
    %99 = vmatpush1.bf16.msra.mxu0 0
    %100 = vmatprep.subr.bf16.mxu0 0
    %101 = vmatpush1.bf16.msra.mxu0 0
    %102 = vmatprep.subr.bf16.mxu0 0
    %103 = vmatpush1.bf16.msra.mxu0 0
    %104 = vmatprep.subr.bf16.mxu0 0
    %105 = vmatpush1.bf16.msra.mxu0 0
    %106 = vmatprep.subr.bf16.mxu0 0
    %107 = vmatpush1.bf16.msra.mxu0 0
    %108 = vmatprep.subr.bf16.mxu0 0
    %109 = vmatpush1.bf16.msra.mxu0 0
    %110 = vmatprep.subr.bf16.mxu0 0
    %111 = vmatpush1.bf16.msra.mxu0 0
    %112 = vmatprep.subr.bf16.mxu0 0
    %113 = vmatpush1.bf16.msra.mxu0 0
    %114 = vmatprep.subr.bf16.mxu0 0
    %115 = vmatpush1.bf16.msra.mxu0 0
    %116 = vmatprep.subr.bf16.mxu0 0
    %117 = vmatpush1.bf16.msra.mxu0 0
    %118 = vmatprep.subr.bf16.mxu0 0
    %119 = vmatpush1.bf16.msra.mxu0 0
    %120 = vmatprep.subr.bf16.mxu0 0
    %121 = vmatpush1.bf16.msra.mxu0 0
    %122 = vmatprep.mubr.bf16.mxu0 0
    %123 = vmatmul.mubr.bf16.gmra.mrb[0].mxu0 %v84
    %v124 = vpop.f32.mrb[0].mxu0
    %v125 = vadd.f32 0.0, %v124
    %v126 = vpop.f32.mrb[0].mxu0
    %v127 = vpop.f32.mrb[0].mxu0
    %v128 = vpop.f32.mrb[0].mxu0
    %129 = vdwg.mxu0
    %v137 = vunpack.c.l.b16 %v63
    %v138 = vunpack.c.l.b16 %v64
    %v139 = vunpack.c.l.b16 %v65
    %v140 = vunpack.c.l.b16 %v66
    %v141 = vunpack.c.l.b16 %v67
    %v142 = vunpack.c.l.b16 %v68
    %v143 = vunpack.c.l.b16 %v69
    %v144 = vpack.c.b16 %v138, %v137
    %v145 = vpack.c.b16 %v140, %v139
    %v146 = vpack.c.b16 %v142, %v141
    %v147 = vpack.c.b16 %v143, %v143
    %vm151 = vcmask 457728
    %v153 = vsel %vm151, %v54, 0
    %v156 = vsel %vm86, %v147, 0
    %158 = vmatprep.subr.bf16.mxu0 0
    %159 = vmatpush1.bf16.msra.mxu0 %v144
    %160 = vmatprep.subr.bf16.mxu0 0
    %161 = vmatpush1.bf16.msra.mxu0 %v145
    %162 = vmatprep.subr.bf16.mxu0 0
    %163 = vmatpush1.bf16.msra.mxu0 %v146
    %164 = vmatprep.subr.bf16.mxu0 0
    %165 = vmatpush1.bf16.msra.mxu0 %v156
    %166 = vmatprep.subr.bf16.mxu0 0
    %167 = vmatpush1.bf16.msra.mxu0 0
    %168 = vmatprep.subr.bf16.mxu0 0
    %169 = vmatpush1.bf16.msra.mxu0 0
    %170 = vmatprep.subr.bf16.mxu0 0
    %171 = vmatpush1.bf16.msra.mxu0 0
    %172 = vmatprep.subr.bf16.mxu0 0
    %173 = vmatpush1.bf16.msra.mxu0 0
    %174 = vmatprep.subr.bf16.mxu0 0
    %175 = vmatpush1.bf16.msra.mxu0 0
    %176 = vmatprep.subr.bf16.mxu0 0
    %177 = vmatpush1.bf16.msra.mxu0 0
    %178 = vmatprep.subr.bf16.mxu0 0
    %179 = vmatpush1.bf16.msra.mxu0 0
    %180 = vmatprep.subr.bf16.mxu0 0
    %181 = vmatpush1.bf16.msra.mxu0 0
    %182 = vmatprep.subr.bf16.mxu0 0
    %183 = vmatpush1.bf16.msra.mxu0 0
    %184 = vmatprep.subr.bf16.mxu0 0
    %185 = vmatpush1.bf16.msra.mxu0 0
    %186 = vmatprep.subr.bf16.mxu0 0
    %187 = vmatpush1.bf16.msra.mxu0 0
    %188 = vmatprep.subr.bf16.mxu0 0
    %189 = vmatpush1.bf16.msra.mxu0 0
    %190 = vmatprep.mubr.bf16.mxu0 0
    %191 = vmatmul.mubr.bf16.gmra.mrb[0].mxu0 %v153
    %v192 = vpop.f32.mrb[0].mxu0
    %v193 = vadd.f32 %v125, %v192
    %v194 = vpop.f32.mrb[0].mxu0
    %v195 = vpop.f32.mrb[0].mxu0
    %v196 = vpop.f32.mrb[0].mxu0
    %197 = vdwg.mxu0
    %v198 = vld [vmem:[%s5] sm:$0x1]
    %v200 = vlaneseq
    %v201 = vshrl.u32 %v200, 7
    %v202 = vsub.s32 0, %v201
    %v203 = vrot.slane %v198, %v202
    %v205 = vadd.f32 %v193, %v203
    %v206 = vld [vmem:[%s4] sm:$0xf]
    %v207 = vld [vmem:[%s4 + $0x4] sm:$0xf]
    %v208 = vld [vmem:[%s4 + $0x8] sm:$0xf]
    %v209 = vld [vmem:[%s4 + $0xc] sm:$0xf]
    %v210 = vld [vmem:[%s6] sm:$0x1]
    %v211 = vld [vmem:[%s7] sm:$0x1]
    %v212 = vpack.c.bf16 %v210, %v210
    %v217 = vunpack.c.l.b16 %v206
    %v218 = vunpack.c.l.b16 %v207
    %v219 = vunpack.c.l.b16 %v208
    %v220 = vunpack.c.l.b16 %v209
    %v221 = vpack.c.b16 %v218, %v217
    %v222 = vpack.c.b16 %v220, %v219
    %vm225 = vcmask 261120
    %v227 = vsel %vm225, %v212, 0
    %229 = vmatprep.subr.bf16.mxu0 0
    %230 = vmatpush1.bf16.msra.mxu0 %v221
    %231 = vmatprep.subr.bf16.mxu0 0
    %232 = vmatpush1.bf16.msra.mxu0 %v222
    %233 = vmatprep.subr.bf16.mxu0 0
    %234 = vmatpush1.bf16.msra.mxu0 0
    %235 = vmatprep.subr.bf16.mxu0 0
    %236 = vmatpush1.bf16.msra.mxu0 0
    %237 = vmatprep.subr.bf16.mxu0 0
    %238 = vmatpush1.bf16.msra.mxu0 0
    %239 = vmatprep.subr.bf16.mxu0 0
    %240 = vmatpush1.bf16.msra.mxu0 0
    %241 = vmatprep.subr.bf16.mxu0 0
    %242 = vmatpush1.bf16.msra.mxu0 0
    %243 = vmatprep.subr.bf16.mxu0 0
    %244 = vmatpush1.bf16.msra.mxu0 0
    %245 = vmatprep.subr.bf16.mxu0 0
    %246 = vmatpush1.bf16.msra.mxu0 0
    %247 = vmatprep.subr.bf16.mxu0 0
    %248 = vmatpush1.bf16.msra.mxu0 0
    %249 = vmatprep.subr.bf16.mxu0 0
    %250 = vmatpush1.bf16.msra.mxu0 0
    %251 = vmatprep.subr.bf16.mxu0 0
    %252 = vmatpush1.bf16.msra.mxu0 0
    %253 = vmatprep.subr.bf16.mxu0 0
    %254 = vmatpush1.bf16.msra.mxu0 0
    %255 = vmatprep.subr.bf16.mxu0 0
    %256 = vmatpush1.bf16.msra.mxu0 0
    %257 = vmatprep.subr.bf16.mxu0 0
    %258 = vmatpush1.bf16.msra.mxu0 0
    %259 = vmatprep.subr.bf16.mxu0 0
    %260 = vmatpush1.bf16.msra.mxu0 0
    %261 = vmatprep.mubr.bf16.mxu0 0
    %262 = vmatmul.mubr.bf16.gmra.mrb[0].mxu0 %v227
    %v263 = vpop.f32.mrb[0].mxu0
    %v264 = vadd.f32 0.0, %v263
    %v265 = vpop.f32.mrb[0].mxu0
    %v266 = vpop.f32.mrb[0].mxu0
    %v267 = vpop.f32.mrb[0].mxu0
    %268 = vdwg.mxu0
    %v269 = vadd.f32 %v205, %v264
    %v270 = vmul.f32 %v269, 0.5
    %v271 = vtanh.pop %v270
    %v272 = vadd.f32 %v271, 1.0
    %v273 = vmul.f32 %v272, 0.5
    %v274 = vtanh.pop %v269
    %v276 = vlaneseq
    %v277 = vshrl.u32 %v276, 7
    %v278 = vsub.s32 0, %v277
    %v279 = vrot.slane %v211, %v278
    %280 = vrot.lane.b32.xlu0 %v279, 32
    %v281 = vpop.permute.xlu0 %280
    %v283 = vmul.f32 %v273, %v281
    %285 = vrot.lane.b32.xlu0 %v274, 64
    %v286 = vpop.permute.xlu0 %285
    %v288 = vmul.f32 %v273, %v286
    %290 = vrot.lane.b32.xlu0 %v288, 32
    %v291 = vpop.permute.xlu0 %290
    %v293 = vadd.f32 %v283, %v291
    %v294 = vtanh.pop %v293
    %296 = vrot.lane.b32.xlu0 %v294, 64
    %v297 = vpop.permute.xlu0 %296
    %v299 = vmul.f32 %v273, %v297
    %v300 = vpack.c.bf16 %v299, %v299
    %302 = vrot.lane.b32.xlu0 %v300, 32
    %v303 = vpop.permute.xlu0 %302
    %v305 = vsel %vm225, %v303, 0
    %307 = vmatprep.subr.bf16.mxu0 0
    %308 = vmatpush1.bf16.msra.mxu0 %v221
    %309 = vmatprep.subr.bf16.mxu0 0
    %310 = vmatpush1.bf16.msra.mxu0 %v222
    %311 = vmatprep.subr.bf16.mxu0 0
    %312 = vmatpush1.bf16.msra.mxu0 0
    %313 = vmatprep.subr.bf16.mxu0 0
    %314 = vmatpush1.bf16.msra.mxu0 0
    %315 = vmatprep.subr.bf16.mxu0 0
    %316 = vmatpush1.bf16.msra.mxu0 0
    %317 = vmatprep.subr.bf16.mxu0 0
    %318 = vmatpush1.bf16.msra.mxu0 0
    %319 = vmatprep.subr.bf16.mxu0 0
    %320 = vmatpush1.bf16.msra.mxu0 0
    %321 = vmatprep.subr.bf16.mxu0 0
    %322 = vmatpush1.bf16.msra.mxu0 0
    %323 = vmatprep.subr.bf16.mxu0 0
    %324 = vmatpush1.bf16.msra.mxu0 0
    %325 = vmatprep.subr.bf16.mxu0 0
    %326 = vmatpush1.bf16.msra.mxu0 0
    %327 = vmatprep.subr.bf16.mxu0 0
    %328 = vmatpush1.bf16.msra.mxu0 0
    %329 = vmatprep.subr.bf16.mxu0 0
    %330 = vmatpush1.bf16.msra.mxu0 0
    %331 = vmatprep.subr.bf16.mxu0 0
    %332 = vmatpush1.bf16.msra.mxu0 0
    %333 = vmatprep.subr.bf16.mxu0 0
    %334 = vmatpush1.bf16.msra.mxu0 0
    %335 = vmatprep.subr.bf16.mxu0 0
    %336 = vmatpush1.bf16.msra.mxu0 0
    %337 = vmatprep.subr.bf16.mxu0 0
    %338 = vmatpush1.bf16.msra.mxu0 0
    %339 = vmatprep.mubr.bf16.mxu0 0
    %340 = vmatmul.mubr.bf16.gmra.mrb[0].mxu0 %v305
    %v341 = vpop.f32.mrb[0].mxu0
    %v342 = vadd.f32 0.0, %v341
    %v343 = vpop.f32.mrb[0].mxu0
    %v344 = vpop.f32.mrb[0].mxu0
    %v345 = vpop.f32.mrb[0].mxu0
    %346 = vdwg.mxu0
    %v348 = vrot.slane %v342, 7
    %v350 = vadd.f32 %v205, %v348
    %v351 = vmul.f32 %v350, 0.5
    %v352 = vtanh.pop %v351
    %v353 = vadd.f32 %v352, 1.0
    %v354 = vmul.f32 %v353, 0.5
    %v355 = vtanh.pop %v350
    %v357 = vrot.slane %v293, 7
    %v359 = vmul.f32 %v354, %v357
    %361 = vrot.lane.b32.xlu0 %v355, 64
    %v362 = vpop.permute.xlu0 %361
    %v364 = vmul.f32 %v354, %v362
    %366 = vrot.lane.b32.xlu0 %v364, 32
    %v367 = vpop.permute.xlu0 %366
    %v369 = vadd.f32 %v359, %v367
    %v370 = vtanh.pop %v369
    %372 = vrot.lane.b32.xlu0 %v370, 64
    %v373 = vpop.permute.xlu0 %372
    %v375 = vmul.f32 %v354, %v373
    %v376 = vpack.c.bf16 %v375, %v375
    %v378 = vshrl.u32 %v376, 16
    %380 = vrot.lane.b32.xlu0 %v378, 32
    %v381 = vpop.permute.xlu0 %380
    %v383 = vsel %vm225, %v381, 0
    %385 = vmatprep.subr.bf16.mxu0 0
    %386 = vmatpush1.bf16.msra.mxu0 %v221
    %387 = vmatprep.subr.bf16.mxu0 0
    %388 = vmatpush1.bf16.msra.mxu0 %v222
    %389 = vmatprep.subr.bf16.mxu0 0
    %390 = vmatpush1.bf16.msra.mxu0 0
    %391 = vmatprep.subr.bf16.mxu0 0
    %392 = vmatpush1.bf16.msra.mxu0 0
    %393 = vmatprep.subr.bf16.mxu0 0
    %394 = vmatpush1.bf16.msra.mxu0 0
    %395 = vmatprep.subr.bf16.mxu0 0
    %396 = vmatpush1.bf16.msra.mxu0 0
    %397 = vmatprep.subr.bf16.mxu0 0
    %398 = vmatpush1.bf16.msra.mxu0 0
    %399 = vmatprep.subr.bf16.mxu0 0
    %400 = vmatpush1.bf16.msra.mxu0 0
    %401 = vmatprep.subr.bf16.mxu0 0
    %402 = vmatpush1.bf16.msra.mxu0 0
    %403 = vmatprep.subr.bf16.mxu0 0
    %404 = vmatpush1.bf16.msra.mxu0 0
    %405 = vmatprep.subr.bf16.mxu0 0
    %406 = vmatpush1.bf16.msra.mxu0 0
    %407 = vmatprep.subr.bf16.mxu0 0
    %408 = vmatpush1.bf16.msra.mxu0 0
    %409 = vmatprep.subr.bf16.mxu0 0
    %410 = vmatpush1.bf16.msra.mxu0 0
    %411 = vmatprep.subr.bf16.mxu0 0
    %412 = vmatpush1.bf16.msra.mxu0 0
    %413 = vmatprep.subr.bf16.mxu0 0
    %414 = vmatpush1.bf16.msra.mxu0 0
    %415 = vmatprep.subr.bf16.mxu0 0
    %416 = vmatpush1.bf16.msra.mxu0 0
    %417 = vmatprep.mubr.bf16.mxu0 0
    %418 = vmatmul.mubr.bf16.gmra.mrb[0].mxu0 %v383
    %v419 = vpop.f32.mrb[0].mxu0
    %v420 = vadd.f32 0.0, %v419
    %v421 = vpop.f32.mrb[0].mxu0
    %v422 = vpop.f32.mrb[0].mxu0
    %v423 = vpop.f32.mrb[0].mxu0
    %424 = vdwg.mxu0
    %v426 = vrot.slane %v420, 6
    %v428 = vadd.f32 %v205, %v426
    %v429 = vmul.f32 %v428, 0.5
    %v430 = vtanh.pop %v429
    %v431 = vadd.f32 %v430, 1.0
    %v432 = vmul.f32 %v431, 0.5
    %v433 = vtanh.pop %v428
    %v435 = vrot.slane %v369, 7
    %v437 = vmul.f32 %v432, %v435
    %439 = vrot.lane.b32.xlu0 %v433, 64
    %v440 = vpop.permute.xlu0 %439
    %v442 = vmul.f32 %v432, %v440
    %444 = vrot.lane.b32.xlu0 %v442, 32
    %v445 = vpop.permute.xlu0 %444
    %v447 = vadd.f32 %v437, %v445
    %v448 = vtanh.pop %v447
    %450 = vrot.lane.b32.xlu0 %v448, 64
    %v451 = vpop.permute.xlu0 %450
    %v453 = vmul.f32 %v432, %v451
    %v454 = vpack.c.bf16 %v453, %v453
    %v456 = vrot.slane %v454, 1
    %457 = vrot.lane.b32.xlu0 %v456, 32
    %v458 = vpop.permute.xlu0 %457
    %v460 = vsel %vm225, %v458, 0
    %462 = vmatprep.subr.bf16.mxu0 0
    %463 = vmatpush1.bf16.msra.mxu0 %v221
    %464 = vmatprep.subr.bf16.mxu0 0
    %465 = vmatpush1.bf16.msra.mxu0 %v222
    %466 = vmatprep.subr.bf16.mxu0 0
    %467 = vmatpush1.bf16.msra.mxu0 0
    %468 = vmatprep.subr.bf16.mxu0 0
    %469 = vmatpush1.bf16.msra.mxu0 0
    %470 = vmatprep.subr.bf16.mxu0 0
    %471 = vmatpush1.bf16.msra.mxu0 0
    %472 = vmatprep.subr.bf16.mxu0 0
    %473 = vmatpush1.bf16.msra.mxu0 0
    %474 = vmatprep.subr.bf16.mxu0 0
    %475 = vmatpush1.bf16.msra.mxu0 0
    %476 = vmatprep.subr.bf16.mxu0 0
    %477 = vmatpush1.bf16.msra.mxu0 0
    %478 = vmatprep.subr.bf16.mxu0 0
    %479 = vmatpush1.bf16.msra.mxu0 0
    %480 = vmatprep.subr.bf16.mxu0 0
    %481 = vmatpush1.bf16.msra.mxu0 0
    %482 = vmatprep.subr.bf16.mxu0 0
    %483 = vmatpush1.bf16.msra.mxu0 0
    %484 = vmatprep.subr.bf16.mxu0 0
    %485 = vmatpush1.bf16.msra.mxu0 0
    %486 = vmatprep.subr.bf16.mxu0 0
    %487 = vmatpush1.bf16.msra.mxu0 0
    %488 = vmatprep.subr.bf16.mxu0 0
    %489 = vmatpush1.bf16.msra.mxu0 0
    %490 = vmatprep.subr.bf16.mxu0 0
    %491 = vmatpush1.bf16.msra.mxu0 0
    %492 = vmatprep.subr.bf16.mxu0 0
    %493 = vmatpush1.bf16.msra.mxu0 0
    %494 = vmatprep.mubr.bf16.mxu0 0
    %495 = vmatmul.mubr.bf16.gmra.mrb[0].mxu0 %v460
    %v496 = vpop.f32.mrb[0].mxu0
    %v497 = vadd.f32 0.0, %v496
    %v498 = vpop.f32.mrb[0].mxu0
    %v499 = vpop.f32.mrb[0].mxu0
    %v500 = vpop.f32.mrb[0].mxu0
    %501 = vdwg.mxu0
    %v503 = vrot.slane %v497, 5
    %v505 = vadd.f32 %v205, %v503
    %v506 = vmul.f32 %v505, 0.5
    %v507 = vtanh.pop %v506
    %v508 = vadd.f32 %v507, 1.0
    %v509 = vmul.f32 %v508, 0.5
    %v510 = vtanh.pop %v505
    %v512 = vrot.slane %v447, 7
    %v514 = vmul.f32 %v509, %v512
    %516 = vrot.lane.b32.xlu0 %v510, 64
    %v517 = vpop.permute.xlu0 %516
    %v519 = vmul.f32 %v509, %v517
    %521 = vrot.lane.b32.xlu0 %v519, 32
    %v522 = vpop.permute.xlu0 %521
    %v524 = vadd.f32 %v514, %v522
    %v525 = vtanh.pop %v524
    %527 = vrot.lane.b32.xlu0 %v525, 64
    %v528 = vpop.permute.xlu0 %527
    %v530 = vmul.f32 %v509, %v528
    %v531 = vpack.c.bf16 %v530, %v530
    %v533 = vshrl.u32 %v531, 16
    %v535 = vrot.slane %v533, 1
    %536 = vrot.lane.b32.xlu0 %v535, 32
    %v537 = vpop.permute.xlu0 %536
    %v539 = vsel %vm225, %v537, 0
    %541 = vmatprep.subr.bf16.mxu0 0
    %542 = vmatpush1.bf16.msra.mxu0 %v221
    %543 = vmatprep.subr.bf16.mxu0 0
    %544 = vmatpush1.bf16.msra.mxu0 %v222
    %545 = vmatprep.subr.bf16.mxu0 0
    %546 = vmatpush1.bf16.msra.mxu0 0
    %547 = vmatprep.subr.bf16.mxu0 0
    %548 = vmatpush1.bf16.msra.mxu0 0
    %549 = vmatprep.subr.bf16.mxu0 0
    %550 = vmatpush1.bf16.msra.mxu0 0
    %551 = vmatprep.subr.bf16.mxu0 0
    %552 = vmatpush1.bf16.msra.mxu0 0
    %553 = vmatprep.subr.bf16.mxu0 0
    %554 = vmatpush1.bf16.msra.mxu0 0
    %555 = vmatprep.subr.bf16.mxu0 0
    %556 = vmatpush1.bf16.msra.mxu0 0
    %557 = vmatprep.subr.bf16.mxu0 0
    %558 = vmatpush1.bf16.msra.mxu0 0
    %559 = vmatprep.subr.bf16.mxu0 0
    %560 = vmatpush1.bf16.msra.mxu0 0
    %561 = vmatprep.subr.bf16.mxu0 0
    %562 = vmatpush1.bf16.msra.mxu0 0
    %563 = vmatprep.subr.bf16.mxu0 0
    %564 = vmatpush1.bf16.msra.mxu0 0
    %565 = vmatprep.subr.bf16.mxu0 0
    %566 = vmatpush1.bf16.msra.mxu0 0
    %567 = vmatprep.subr.bf16.mxu0 0
    %568 = vmatpush1.bf16.msra.mxu0 0
    %569 = vmatprep.subr.bf16.mxu0 0
    %570 = vmatpush1.bf16.msra.mxu0 0
    %571 = vmatprep.subr.bf16.mxu0 0
    %572 = vmatpush1.bf16.msra.mxu0 0
    %573 = vmatprep.mubr.bf16.mxu0 0
    %574 = vmatmul.mubr.bf16.gmra.mrb[0].mxu0 %v539
    %v575 = vpop.f32.mrb[0].mxu0
    %v576 = vadd.f32 0.0, %v575
    %v577 = vpop.f32.mrb[0].mxu0
    %v578 = vpop.f32.mrb[0].mxu0
    %v579 = vpop.f32.mrb[0].mxu0
    %580 = vdwg.mxu0
    %v582 = vrot.slane %v576, 4
    %v584 = vadd.f32 %v205, %v582
    %v585 = vmul.f32 %v584, 0.5
    %v586 = vtanh.pop %v585
    %v587 = vadd.f32 %v586, 1.0
    %v588 = vmul.f32 %v587, 0.5
    %v589 = vtanh.pop %v584
    %v591 = vrot.slane %v524, 7
    %v593 = vmul.f32 %v588, %v591
    %595 = vrot.lane.b32.xlu0 %v589, 64
    %v596 = vpop.permute.xlu0 %595
    %v598 = vmul.f32 %v588, %v596
    %600 = vrot.lane.b32.xlu0 %v598, 32
    %v601 = vpop.permute.xlu0 %600
    %v603 = vadd.f32 %v593, %v601
    %v604 = vtanh.pop %v603
    %606 = vrot.lane.b32.xlu0 %v604, 64
    %v607 = vpop.permute.xlu0 %606
    %v609 = vmul.f32 %v588, %v607
    %v610 = vpack.c.bf16 %v609, %v609
    %v612 = vrot.slane %v610, 2
    %613 = vrot.lane.b32.xlu0 %v612, 32
    %v614 = vpop.permute.xlu0 %613
    %v616 = vsel %vm225, %v614, 0
    %618 = vmatprep.subr.bf16.mxu0 0
    %619 = vmatpush1.bf16.msra.mxu0 %v221
    %620 = vmatprep.subr.bf16.mxu0 0
    %621 = vmatpush1.bf16.msra.mxu0 %v222
    %622 = vmatprep.subr.bf16.mxu0 0
    %623 = vmatpush1.bf16.msra.mxu0 0
    %624 = vmatprep.subr.bf16.mxu0 0
    %625 = vmatpush1.bf16.msra.mxu0 0
    %626 = vmatprep.subr.bf16.mxu0 0
    %627 = vmatpush1.bf16.msra.mxu0 0
    %628 = vmatprep.subr.bf16.mxu0 0
    %629 = vmatpush1.bf16.msra.mxu0 0
    %630 = vmatprep.subr.bf16.mxu0 0
    %631 = vmatpush1.bf16.msra.mxu0 0
    %632 = vmatprep.subr.bf16.mxu0 0
    %633 = vmatpush1.bf16.msra.mxu0 0
    %634 = vmatprep.subr.bf16.mxu0 0
    %635 = vmatpush1.bf16.msra.mxu0 0
    %636 = vmatprep.subr.bf16.mxu0 0
    %637 = vmatpush1.bf16.msra.mxu0 0
    %638 = vmatprep.subr.bf16.mxu0 0
    %639 = vmatpush1.bf16.msra.mxu0 0
    %640 = vmatprep.subr.bf16.mxu0 0
    %641 = vmatpush1.bf16.msra.mxu0 0
    %642 = vmatprep.subr.bf16.mxu0 0
    %643 = vmatpush1.bf16.msra.mxu0 0
    %644 = vmatprep.subr.bf16.mxu0 0
    %645 = vmatpush1.bf16.msra.mxu0 0
    %646 = vmatprep.subr.bf16.mxu0 0
    %647 = vmatpush1.bf16.msra.mxu0 0
    %648 = vmatprep.subr.bf16.mxu0 0
    %649 = vmatpush1.bf16.msra.mxu0 0
    %650 = vmatprep.mubr.bf16.mxu0 0
    %651 = vmatmul.mubr.bf16.gmra.mrb[0].mxu0 %v616
    %v652 = vpop.f32.mrb[0].mxu0
    %v653 = vadd.f32 0.0, %v652
    %v654 = vpop.f32.mrb[0].mxu0
    %v655 = vpop.f32.mrb[0].mxu0
    %v656 = vpop.f32.mrb[0].mxu0
    %657 = vdwg.mxu0
    %v659 = vrot.slane %v653, 3
    %v661 = vadd.f32 %v205, %v659
    %v662 = vmul.f32 %v661, 0.5
    %v663 = vtanh.pop %v662
    %v664 = vadd.f32 %v663, 1.0
    %v665 = vmul.f32 %v664, 0.5
    %v666 = vtanh.pop %v661
    %v668 = vrot.slane %v603, 7
    %v670 = vmul.f32 %v665, %v668
    %672 = vrot.lane.b32.xlu0 %v666, 64
    %v673 = vpop.permute.xlu0 %672
    %v675 = vmul.f32 %v665, %v673
    %677 = vrot.lane.b32.xlu0 %v675, 32
    %v678 = vpop.permute.xlu0 %677
    %v680 = vadd.f32 %v670, %v678
    %v681 = vtanh.pop %v680
    %683 = vrot.lane.b32.xlu0 %v681, 64
    %v684 = vpop.permute.xlu0 %683
    %v686 = vmul.f32 %v665, %v684
    %v687 = vpack.c.bf16 %v686, %v686
    %v689 = vshrl.u32 %v687, 16
    %v691 = vrot.slane %v689, 2
    %692 = vrot.lane.b32.xlu0 %v691, 32
    %v693 = vpop.permute.xlu0 %692
    %v695 = vsel %vm225, %v693, 0
    %697 = vmatprep.subr.bf16.mxu0 0
    %698 = vmatpush1.bf16.msra.mxu0 %v221
    %699 = vmatprep.subr.bf16.mxu0 0
    %700 = vmatpush1.bf16.msra.mxu0 %v222
    %701 = vmatprep.subr.bf16.mxu0 0
    %702 = vmatpush1.bf16.msra.mxu0 0
    %703 = vmatprep.subr.bf16.mxu0 0
    %704 = vmatpush1.bf16.msra.mxu0 0
    %705 = vmatprep.subr.bf16.mxu0 0
    %706 = vmatpush1.bf16.msra.mxu0 0
    %707 = vmatprep.subr.bf16.mxu0 0
    %708 = vmatpush1.bf16.msra.mxu0 0
    %709 = vmatprep.subr.bf16.mxu0 0
    %710 = vmatpush1.bf16.msra.mxu0 0
    %711 = vmatprep.subr.bf16.mxu0 0
    %712 = vmatpush1.bf16.msra.mxu0 0
    %713 = vmatprep.subr.bf16.mxu0 0
    %714 = vmatpush1.bf16.msra.mxu0 0
    %715 = vmatprep.subr.bf16.mxu0 0
    %716 = vmatpush1.bf16.msra.mxu0 0
    %717 = vmatprep.subr.bf16.mxu0 0
    %718 = vmatpush1.bf16.msra.mxu0 0
    %719 = vmatprep.subr.bf16.mxu0 0
    %720 = vmatpush1.bf16.msra.mxu0 0
    %721 = vmatprep.subr.bf16.mxu0 0
    %722 = vmatpush1.bf16.msra.mxu0 0
    %723 = vmatprep.subr.bf16.mxu0 0
    %724 = vmatpush1.bf16.msra.mxu0 0
    %725 = vmatprep.subr.bf16.mxu0 0
    %726 = vmatpush1.bf16.msra.mxu0 0
    %727 = vmatprep.subr.bf16.mxu0 0
    %728 = vmatpush1.bf16.msra.mxu0 0
    %729 = vmatprep.mubr.bf16.mxu0 0
    %730 = vmatmul.mubr.bf16.gmra.mrb[0].mxu0 %v695
    %v731 = vpop.f32.mrb[0].mxu0
    %v732 = vadd.f32 0.0, %v731
    %v733 = vpop.f32.mrb[0].mxu0
    %v734 = vpop.f32.mrb[0].mxu0
    %v735 = vpop.f32.mrb[0].mxu0
    %736 = vdwg.mxu0
    %v738 = vrot.slane %v732, 2
    %v740 = vadd.f32 %v205, %v738
    %v741 = vmul.f32 %v740, 0.5
    %v742 = vtanh.pop %v741
    %v743 = vadd.f32 %v742, 1.0
    %v744 = vmul.f32 %v743, 0.5
    %v745 = vtanh.pop %v740
    %v747 = vrot.slane %v680, 7
    %v749 = vmul.f32 %v744, %v747
    %751 = vrot.lane.b32.xlu0 %v745, 64
    %v752 = vpop.permute.xlu0 %751
    %v754 = vmul.f32 %v744, %v752
    %756 = vrot.lane.b32.xlu0 %v754, 32
    %v757 = vpop.permute.xlu0 %756
    %v759 = vadd.f32 %v749, %v757
    %v760 = vtanh.pop %v759
    %762 = vrot.lane.b32.xlu0 %v760, 64
    %v763 = vpop.permute.xlu0 %762
    %v765 = vmul.f32 %v744, %v763
    %v766 = vpack.c.bf16 %v765, %v765
    %v768 = vrot.slane %v766, 3
    %769 = vrot.lane.b32.xlu0 %v768, 32
    %v770 = vpop.permute.xlu0 %769
    %v772 = vsel %vm225, %v770, 0
    %774 = vmatprep.subr.bf16.mxu0 0
    %775 = vmatpush1.bf16.msra.mxu0 %v221
    %776 = vmatprep.subr.bf16.mxu0 0
    %777 = vmatpush1.bf16.msra.mxu0 %v222
    %778 = vmatprep.subr.bf16.mxu0 0
    %779 = vmatpush1.bf16.msra.mxu0 0
    %780 = vmatprep.subr.bf16.mxu0 0
    %781 = vmatpush1.bf16.msra.mxu0 0
    %782 = vmatprep.subr.bf16.mxu0 0
    %783 = vmatpush1.bf16.msra.mxu0 0
    %784 = vmatprep.subr.bf16.mxu0 0
    %785 = vmatpush1.bf16.msra.mxu0 0
    %786 = vmatprep.subr.bf16.mxu0 0
    %787 = vmatpush1.bf16.msra.mxu0 0
    %788 = vmatprep.subr.bf16.mxu0 0
    %789 = vmatpush1.bf16.msra.mxu0 0
    %790 = vmatprep.subr.bf16.mxu0 0
    %791 = vmatpush1.bf16.msra.mxu0 0
    %792 = vmatprep.subr.bf16.mxu0 0
    %793 = vmatpush1.bf16.msra.mxu0 0
    %794 = vmatprep.subr.bf16.mxu0 0
    %795 = vmatpush1.bf16.msra.mxu0 0
    %796 = vmatprep.subr.bf16.mxu0 0
    %797 = vmatpush1.bf16.msra.mxu0 0
    %798 = vmatprep.subr.bf16.mxu0 0
    %799 = vmatpush1.bf16.msra.mxu0 0
    %800 = vmatprep.subr.bf16.mxu0 0
    %801 = vmatpush1.bf16.msra.mxu0 0
    %802 = vmatprep.subr.bf16.mxu0 0
    %803 = vmatpush1.bf16.msra.mxu0 0
    %804 = vmatprep.subr.bf16.mxu0 0
    %805 = vmatpush1.bf16.msra.mxu0 0
    %806 = vmatprep.mubr.bf16.mxu0 0
    %807 = vmatmul.mubr.bf16.gmra.mrb[0].mxu0 %v772
    %v808 = vpop.f32.mrb[0].mxu0
    %v809 = vadd.f32 0.0, %v808
    %v810 = vpop.f32.mrb[0].mxu0
    %v811 = vpop.f32.mrb[0].mxu0
    %v812 = vpop.f32.mrb[0].mxu0
    %813 = vdwg.mxu0
    %v815 = vrot.slane %v809, 1
    %v817 = vadd.f32 %v205, %v815
    %v818 = vmul.f32 %v817, 0.5
    %v819 = vtanh.pop %v818
    %v820 = vadd.f32 %v819, 1.0
    %v821 = vmul.f32 %v820, 0.5
    %v822 = vtanh.pop %v817
    %v824 = vrot.slane %v759, 7
    %v826 = vmul.f32 %v821, %v824
    %828 = vrot.lane.b32.xlu0 %v822, 64
    %v829 = vpop.permute.xlu0 %828
    %v831 = vmul.f32 %v821, %v829
    %833 = vrot.lane.b32.xlu0 %v831, 32
    %v834 = vpop.permute.xlu0 %833
    %v836 = vadd.f32 %v826, %v834
    %v837 = vtanh.pop %v836
    %839 = vrot.lane.b32.xlu0 %v837, 64
    %v840 = vpop.permute.xlu0 %839
    %v842 = vmul.f32 %v821, %v840
    %v844 = vrot.slane %v836, 7
    %845 = vrot.lane.b32.xlu0 %v844, 64
    %v846 = vpop.permute.xlu0 %845
    %vm847 = vcmask 1040384
    %v848 = vsel %vm847, %v299, %v375
    %vm849 = vcmask 1041408
    %v850 = vsel %vm849, %v848, %v453
    %vm851 = vcmask 1042432
    %v852 = vsel %vm851, %v850, %v530
    %v853 = vsel %vm86, %v852, %v609
    %vm854 = vcmask 1044480
    %v855 = vsel %vm854, %v853, %v686
    %vm856 = vcmask 1045504
    %v857 = vsel %vm856, %v855, %v765
    %vm858 = vcmask 1046528
    %v859 = vsel %vm858, %v857, %v842
    %861 = vrot.lane.b32.xlu0 %v859, 32
    %v862 = vpop.permute.xlu0 %861
    %863 = vrot.lane.b32.xlu0 %v846, 32
    %v864 = vpop.permute.xlu0 %863
    %867 = vst.msk [vmem:[#allocation5] sm:$0xff] %vm225, %v862
    %vm868 = vcmask 253952
    %869 = vst.msk [vmem:[#allocation5 + $0x8] sm:$0x1] %vm868, %v864
    // Predicated region
    $region38: #{lstm_pallas.1} parent=1 // pred_check
      _
    $region39: #{lstm_pallas.1} parent=1 // pred_check_branch
      %871 = sbr.rel (0) target = $region41
    $region40: #{lstm_pallas.1} parent=1 // pred_region
      %s873 = ssub.s32 256, 256
      %874 = vsyncadd [#allocation4], %s873
      %s875 = sshll.u32 [#allocation5], 4
      %s876 = int_to_ptr.vmem [resolvable:$true] %s875
      %881 = dma.vmem_to_hbm [thread:$0]  %s876, 256, %s8, [#allocation4], 128, 128, 8
    $region41: #{lstm_pallas.1} parent=1 // pred_fallthru
      _
    // Predicated region
    $region42: #{lstm_pallas.1} parent=1 // pred_check
      _
    $region43: #{lstm_pallas.1} parent=1 // pred_check_branch
      %883 = sbr.rel (0) target = $region45
    $region44: #{lstm_pallas.1} parent=1 // pred_region
      %884 = dma.done [#allocation4], 256
    $region45: #{lstm_pallas.1} parent=1 // pred_fallthru
      _
    %885 = vsyncpa [#allocation3], 1
    %886 = vsyncpa [#allocation4], 1

</llo_original>
